<compile_context>
chip_gen: v5e
topology: v5e:2x2
jax: 0.10.0
libtpu: 0.0.40
codegen_flags: <defaults>
</compile_context>

<pallas_src>
import functools

import jax
import jax.numpy as jnp
from jax.experimental import pallas as pl
from jax.experimental.pallas import tpu as pltpu

NEG_BIG = -1e30  # "minus infinity" bias for padded vocab logits (exact zero prob)


def _round_up(x: int, m: int) -> int:
    return (x + m - 1) // m * m


# ----------------------------------------------------------------------------
# Kernel 1: embedding -> GRU step -> dot attention -> concat linear (+ hidden)
# ----------------------------------------------------------------------------
def decoder_core_kernel(
    x_ref,      # (Bp, H)    embedded tokens (compute dtype)
    h_ref,      # (Bp, H)    previous hidden state (f32)
    enc_ref,    # (Bp, S, H) encoder outputs, batch-major (compute dtype)
    wih_ref,    # (H, 3H)    packed input->gate weights  (r | z | n)
    whh_ref,    # (H, 3H)    packed hidden->gate weights (r | z | n)
    bih_ref,    # (1, 3H)    f32
    bhh_ref,    # (1, 3H)    f32
    wch_ref,    # (H, H)     concat-linear slice applied to rnnOutput
    wcc_ref,    # (H, H)     concat-linear slice applied to context
    bc_ref,     # (1, H)     f32
    cc_ref,     # (Bp, H)    OUT: concat_out (compute dtype), feeds projection
    hid_ref,    # (Bp, H)    OUT: new hidden (f32, aliases h_ref's buffer)
):
    H = h_ref.shape[1]
    cd = x_ref.dtype

    h = h_ref[...]                                   # (Bp, H) f32 (hidden kept f32)
    x = x_ref[...]                                   # (Bp, H) compute dtype

    # ---- GRU step: two (H, 3H) packed matmuls, f32 accumulation ----
    gi = jnp.dot(x, wih_ref[...], preferred_element_type=jnp.float32) + bih_ref[...]
    gh = (jnp.dot(h.astype(cd), whh_ref[...], preferred_element_type=jnp.float32)
          + bhh_ref[...])
    r = jax.nn.sigmoid(gi[:, 0:H] + gh[:, 0:H])
    z = jax.nn.sigmoid(gi[:, H:2 * H] + gh[:, H:2 * H])
    n = jnp.tanh(gi[:, 2 * H:3 * H] + r * gh[:, 2 * H:3 * H])
    h_new = (1.0 - z) * n + z * h                    # (Bp, H) f32

    # ---- Luong dot attention: MXU contractions, S on the lane axis ----
    enc = enc_ref[...]                               # (Bp, S, H)
    hq = h_new.astype(cd)[:, None, :]                # (Bp, 1, H)
    scores = jnp.einsum('bqh,bsh->bqs', hq, enc,
                        preferred_element_type=jnp.float32)      # (Bp, 1, S)
    sm = jnp.max(scores, axis=-1, keepdims=True)
    p = jnp.exp(scores - sm)
    inv = pl.reciprocal(jnp.sum(p, axis=-1, keepdims=True), approx=False)
    attn = (p * inv).astype(cd)                      # (Bp, 1, S)
    ctx = jnp.einsum('bqs,bsh->bqh', attn, enc,
                     preferred_element_type=jnp.float32)         # (Bp, 1, H)
    context = ctx[:, 0, :]                           # (Bp, H) f32

    # ---- concat linear split into two matmuls (no jnp.concatenate) + tanh ----
    cc = jnp.tanh(
        jnp.dot(h_new.astype(cd), wch_ref[...], preferred_element_type=jnp.float32)
        + jnp.dot(context.astype(cd), wcc_ref[...], preferred_element_type=jnp.float32)
        + bc_ref[...])                               # (Bp, H) f32

    cc_ref[...] = cc.astype(cc_ref.dtype)
    hid_ref[...] = h_new                             # aliases h_ref's buffer


# ----------------------------------------------------------------------------
# Kernel 2: vocab-tiled output projection + per-tile softmax statistics
# ----------------------------------------------------------------------------
def vocab_tile_kernel(
    cc_ref,     # (Bp, H)   concat_out (compute dtype), constant block
    wo_ref,     # (H, TN)   output projection tile (compute dtype)
    bo_ref,     # (1, TN)   f32 bias tile, padded columns hold -1e30
    e_ref,      # (Bp, TN)  OUT: exp(logits - m_tile)   (f32)
    stats_ref,  # (Bp, 128) OUT: lane 0 = m_tile, lane 1 = l_tile (f32)
):
    logits = (jnp.dot(cc_ref[...], wo_ref[...], preferred_element_type=jnp.float32)
              + bo_ref[...])                                     # (Bp, TN)
    m = jnp.max(logits, axis=-1, keepdims=True)                  # per-tile max
    e = jnp.exp(logits - m)                                      # padded cols -> 0
    e_ref[...] = e
    l = jnp.sum(e, axis=-1, keepdims=True)                       # per-tile sum
    lane = jax.lax.broadcasted_iota(jnp.int32, stats_ref.shape, 1)
    stats_ref[...] = jnp.where(lane == 0, m, jnp.where(lane == 1, l, 0.0))


# ----------------------------------------------------------------------------
# Per-step forward (jitted); all weight prep is done once in make_decoder.
# ----------------------------------------------------------------------------
def _decoder_step(prepped, input_step, last_hidden, enc_bsh,
                  *, B, Bp, H, V, Vp, TN, NT, cd):
    f32 = jnp.float32

    # Embedding gather (no one-hot matmul).  Eval-mode dropout == identity.
    ids = jnp.zeros((Bp,), jnp.int32).at[:B].set(input_step[0].astype(jnp.int32))
    x = jnp.take(prepped["emb"], ids, axis=0)                    # (Bp, H) compute dtype

    h0 = jnp.zeros((Bp, H), f32).at[:B].set(last_hidden[0])      # (Bp, H) f32

    vmem = pl.BlockSpec(memory_space=pltpu.MemorySpace.VMEM)
    cc, hid = pl.pallas_call(
        decoder_core_kernel,
        out_shape=(jax.ShapeDtypeStruct((Bp, H), cd),
                   jax.ShapeDtypeStruct((Bp, H), f32)),
        in_specs=[vmem] * 10,
        out_specs=(vmem, vmem),
        input_output_aliases={1: 1},      # reuse h0's buffer for the new hidden
    )(x, h0, enc_bsh,
      prepped["wih"], prepped["whh"], prepped["bih"], prepped["bhh"],
      prepped["wch"], prepped["wcc"], prepped["bc"])

    # Vocab-tiled projection: w_out streams tile-by-tile, double-buffered.
    db = jnp.dtype(cd).itemsize
    block_bytes = H * TN * db + TN * 4 + Bp * TN * 4 + Bp * 128 * 4 + Bp * H * db
    vmem_limit = int(min(max(4 * block_bytes, 16 << 20), 100 << 20))
    e, stats = pl.pallas_call(
        vocab_tile_kernel,
        out_shape=(jax.ShapeDtypeStruct((Bp, Vp), jnp.float32),
                   jax.ShapeDtypeStruct((Bp, NT * 128), jnp.float32)),
        grid=(NT,),
        in_specs=[pl.BlockSpec((Bp, H), lambda j: (0, 0)),
                  pl.BlockSpec((H, TN), lambda j: (0, j)),
                  pl.BlockSpec((1, TN), lambda j: (0, j))],
        out_specs=(pl.BlockSpec((Bp, TN), lambda j: (0, j)),
                   pl.BlockSpec((Bp, 128), lambda j: (0, j))),
        compiler_params=pltpu.CompilerParams(
            dimension_semantics=("parallel",),   # tiles independent -> v7x 2 TCs
            vmem_limit_bytes=vmem_limit),
        cost_estimate=pl.CostEstimate(
            flops=2 * Bp * H * Vp,
            transcendentals=Bp * Vp,
            bytes_accessed=(H * Vp * db + Vp * 4 + Bp * H * db
                            + Bp * Vp * 4 + Bp * NT * 128 * 4)),
    )(cc, prepped["wo"], prepped["bo"])

    # Exact softmax combine across vocab tiles (tiny O(B*V) elementwise op).
    st = stats.reshape(Bp, NT, 128)
    m = st[:, :, 0]                                              # (Bp, NT)
    l = st[:, :, 1]                                              # (Bp, NT)
    M = jnp.max(m, axis=1, keepdims=True)                        # (Bp, 1)
    scale = jnp.exp(m - M)                                       # padded tiles -> 0
    L = jnp.sum(l * scale, axis=1, keepdims=True)                # (Bp, 1)
    probs = (e.reshape(Bp, NT, TN) * (scale / L)[:, :, None]).reshape(Bp, Vp)

    return probs[:B, :V], hid[:B][None]                          # ((B, V), (1, B, H))


def make_decoder(params, batch_size, *, compute_dtype=jnp.float32, tile_n=512):
    """One-time weight packing / padding / casting, hoisted out of the decode step."""
    f32 = jnp.float32
    cd = jnp.dtype(compute_dtype)
    H = params["w_concat"].shape[1]
    V = params["w_out"].shape[1]

    sub = 16 if cd == jnp.bfloat16 else 8            # bf16 tiles pack 16 sublanes
    Bp = _round_up(batch_size, sub)
    Vp0 = _round_up(V, 128)
    TN = min(tile_n, Vp0)                            # vocab tile (lane-dense)
    Vp = _round_up(Vp0, TN)
    NT = Vp // TN

    # Packed GRU gates (r | z | n), no zero pad blocks.
    wih = jnp.concatenate([params["w_ih"][g] for g in range(3)], axis=1)
    whh = jnp.concatenate([params["w_hh"][g] for g in range(3)], axis=1)
    bih = jnp.concatenate([params["b_ih"][g] for g in range(3)], axis=1).astype(f32)
    bhh = jnp.concatenate([params["b_hh"][g] for g in range(3)], axis=1).astype(f32)

    prepped = {
        "emb": params["embedding"].astype(cd),
        "wih": wih.astype(cd),
        "whh": whh.astype(cd),
        "bih": bih,
        "bhh": bhh,
        "wch": params["w_concat"][:H].astype(cd),
        "wcc": params["w_concat"][H:].astype(cd),
        "bc": params["b_concat"].astype(f32),
        "wo": jnp.zeros((H, Vp), cd).at[:, :V].set(params["w_out"].astype(cd)),
        "bo": jnp.full((1, Vp), NEG_BIG, f32).at[:, :V].set(params["b_out"]),
    }

    step = jax.jit(functools.partial(
        _decoder_step, B=batch_size, Bp=Bp, H=H, V=V, Vp=Vp, TN=TN, NT=NT, cd=cd))

    def prep_encoder(encoder_outputs):
        # (S, B, H) -> batch-major (Bp, S, H), once per source sequence.
        S = encoder_outputs.shape[0]
        return jnp.zeros((Bp, S, H), cd).at[:batch_size].set(
            jnp.transpose(encoder_outputs, (1, 0, 2)).astype(cd))

    return prepped, step, prep_encoder


def init_params(key, hidden_size, output_size):
    """Deterministic synthetic parameters (PyTorch-like uniform(-1/sqrt(H), 1/sqrt(H)))."""
    H, V = hidden_size, output_size
    k = 1.0 / jnp.sqrt(jnp.float32(H))
    keys = jax.random.split(key, 9)
    u = lambda kk, shape: jax.random.uniform(kk, shape, jnp.float32, -k, k)
    return {
        "embedding": jax.random.normal(keys[0], (V, H), jnp.float32) * 0.1,
        # stored pre-transposed: (3, H_in, H_out), gate order (r, z, n)
        "w_ih": u(keys[1], (3, H, H)),
        "w_hh": u(keys[2], (3, H, H)),
        "b_ih": u(keys[3], (3, 1, H)),
        "b_hh": u(keys[4], (3, 1, H)),
        "w_concat": u(keys[5], (2 * H, H)),
        "b_concat": u(keys[6], (1, H)),
        "w_out": u(keys[7], (H, V)),
        "b_out": u(keys[8], (1, V)),
    }


def _reference(input_step, last_hidden, encoder_outputs, params):
    """Pure-JAX f32 reference mirroring DecoderRNN.forward (nLayers=1, eval dropout)."""
    x = params["embedding"][input_step[0]]           # (B, H)
    h = last_hidden[0]
    gi = [x @ params["w_ih"][g] + params["b_ih"][g] for g in range(3)]
    gh = [h @ params["w_hh"][g] + params["b_hh"][g] for g in range(3)]
    r = jax.nn.sigmoid(gi[0] + gh[0])
    z = jax.nn.sigmoid(gi[1] + gh[1])
    n = jnp.tanh(gi[2] + r * gh[2])
    h_new = (1 - z) * n + z * h
    scores = jnp.einsum("bh,sbh->bs", h_new, encoder_outputs)
    w = jax.nn.softmax(scores, axis=1)
    ctx = jnp.einsum("bs,sbh->bh", w, encoder_outputs)
    cat = jnp.concatenate([h_new, ctx], axis=1)
    co = jnp.tanh(cat @ params["w_concat"] + params["b_concat"])
    out = jax.nn.softmax(co @ params["w_out"] + params["b_out"], axis=1)
    return out, h_new[None]


if __name__ == "__main__":
    # small shapes consistent with the module's forward
    B, S, H, V = 4, 8, 32, 64     # batch, src-seq-len, hiddenSize, outputSize
    key = jax.random.PRNGKey(0)
    k_p, k_tok, k_h, k_enc = jax.random.split(key, 4)

    params = init_params(k_p, H, V)
    input_step = jax.random.randint(k_tok, (1, B), 0, V)                # (1, B) token ids
    last_hidden = jax.random.normal(k_h, (1, B, H), jnp.float32)        # (nLayers, B, H)
    encoder_outputs = jax.random.normal(k_enc, (S, B, H), jnp.float32)  # (S, B, H)

    ref_out, ref_hidden = _reference(input_step, last_hidden, encoder_outputs, params)

    # ---- f32 path: exact parity with the reference ----
    prepped, step, prep_enc = make_decoder(params, B, compute_dtype=jnp.float32)
    enc_bsh = prep_enc(encoder_outputs)
    out, hidden = step(prepped, input_step, last_hidden, enc_bsh)
    jax.block_until_ready((out, hidden))
    assert out.shape == (B, V) and hidden.shape == (1, B, H)
    assert jnp.allclose(out, ref_out, atol=1e-5, rtol=1e-5)
    assert jnp.allclose(hidden, ref_hidden, atol=1e-5, rtol=1e-5)
    assert jnp.allclose(jnp.sum(out, axis=1), 1.0, atol=1e-5)

    # ---- bf16 matmul operands (f32 accumulate / f32 elementwise): perf path ----
    prepped16, step16, prep_enc16 = make_decoder(params, B, compute_dtype=jnp.bfloat16)
    out16, hidden16 = step16(prepped16, input_step, last_hidden, prep_enc16(encoder_outputs))
    jax.block_until_ready((out16, hidden16))
    assert jnp.allclose(out16, ref_out, atol=5e-2, rtol=5e-2)
    assert jnp.allclose(hidden16, ref_hidden, atol=5e-2, rtol=5e-2)
    assert jnp.allclose(jnp.sum(out16, axis=1), 1.0, atol=1e-3)   # normalization is f32-exact

    print("KERNEL_OK")
</pallas_src>

<mosaic_0001>
module attributes {stable_mosaic.version = 11 : i64} {
  func.func @vocab_tile_kernel(%arg0: i32, %arg1: memref<8x32xf32, #tpu.memory_space<vmem>>, %arg2: memref<32x128xf32, #tpu.memory_space<vmem>>, %arg3: memref<1x128xf32, #tpu.memory_space<vmem>>, %arg4: memref<8x128xf32, #tpu.memory_space<vmem>>, %arg5: memref<8x128xf32, #tpu.memory_space<vmem>>) attributes {dimension_semantics = [#tpu.dimension_semantics<parallel>], iteration_bounds = array<i64: 1>, scalar_prefetch = 0 : i64, scratch_operands = 0 : i64, tpu.core_type = #tpu.core_type<tc>, window_params = [{pipeline_mode = #tpu.pipeline_mode<synchronous>, transform_indices = @transform_0, window_bounds = array<i64: 8, 32>}, {transform_indices = @transform_1, window_bounds = array<i64: 32, 128>}, {transform_indices = @transform_2, window_bounds = array<i64: 1, 128>}, {transform_indices = @transform_3, window_bounds = array<i64: 8, 128>}, {transform_indices = @transform_4, window_bounds = array<i64: 8, 128>}]} {
    %c0 = arith.constant 0 : index
    %c0_0 = arith.constant 0 : index
    %0 = vector.load %arg1[%c0, %c0_0] : memref<8x32xf32, #tpu.memory_space<vmem>>, vector<8x32xf32>
    %c0_1 = arith.constant 0 : index
    %c0_2 = arith.constant 0 : index
    %1 = vector.load %arg2[%c0_1, %c0_2] : memref<32x128xf32, #tpu.memory_space<vmem>>, vector<32x128xf32>
    %cst = arith.constant dense<0.000000e+00> : vector<8x128xf32>
    %2 = tpu.matmul %0, %1, %cst {dimension_numbers = #tpu.dot_dimension_numbers<[1], [0], [0], [1], [0, 0, 1, 1], [], []>} : vector<8x32xf32>, vector<32x128xf32>, vector<8x128xf32> -> vector<8x128xf32>
    %c0_3 = arith.constant 0 : index
    %c0_4 = arith.constant 0 : index
    %3 = vector.load %arg3[%c0_3, %c0_4] : memref<1x128xf32, #tpu.memory_space<vmem>>, vector<1x128xf32>
    %4 = vector.broadcast %3 : vector<1x128xf32> to vector<8x128xf32>
    %5 = arith.addf %2, %4 : vector<8x128xf32>
    %cst_5 = arith.constant dense<0xFF800000> : vector<8xf32>
    %6 = vector.multi_reduction <maximumf>, %5, %cst_5 [1] : vector<8x128xf32> to vector<8xf32>
    %7 = vector.shape_cast %6 : vector<8xf32> to vector<8x1xf32>
    %8 = vector.broadcast %7 : vector<8x1xf32> to vector<8x128xf32>
    %9 = arith.subf %5, %8 : vector<8x128xf32>
    %10 = math.exp %9 : vector<8x128xf32>
    %c0_6 = arith.constant 0 : index
    %c0_7 = arith.constant 0 : index
    %11 = vector.load %arg4[%c0_6, %c0_7] : memref<8x128xf32, #tpu.memory_space<vmem>>, vector<8x128xf32>
    tpu.vector_store %arg4[%c0_6, %c0_7], %10 {strides = array<i32>} : memref<8x128xf32, #tpu.memory_space<vmem>>, vector<8x128xf32>,
    %cst_8 = arith.constant dense<0.000000e+00> : vector<8xf32>
    %12 = vector.multi_reduction <add>, %10, %cst_8 [1] : vector<8x128xf32> to vector<8xf32>
    %13 = vector.shape_cast %12 : vector<8xf32> to vector<8x1xf32>
    %14 = tpu.iota {dimensions = array<i32: 1>} : vector<8x128xi32>
    %c0_i32 = arith.constant 0 : i32
    %15 = vector.broadcast %c0_i32 : i32 to vector<8x128xi32>
    %16 = arith.cmpi eq, %14, %15 : vector<8x128xi32>
    %c1_i32 = arith.constant 1 : i32
    %17 = vector.broadcast %c1_i32 : i32 to vector<8x128xi32>
    %18 = arith.cmpi eq, %14, %17 : vector<8x128xi32>
    %cst_9 = arith.constant 0.000000e+00 : f32
    %19 = vector.shape_cast %13 : vector<8x1xf32> to vector<8x1xf32>
    %20 = vector.broadcast %19 : vector<8x1xf32> to vector<8x128xf32>
    %21 = vector.broadcast %cst_9 : f32 to vector<8x128xf32>
    %22 = arith.select %18, %20, %21 : vector<8x128xi1>, vector<8x128xf32>
    %23 = vector.shape_cast %7 : vector<8x1xf32> to vector<8x1xf32>
    %24 = vector.broadcast %23 : vector<8x1xf32> to vector<8x128xf32>
    %25 = arith.select %16, %24, %22 : vector<8x128xi1>, vector<8x128xf32>
    %c0_10 = arith.constant 0 : index
    %c0_11 = arith.constant 0 : index
    %26 = vector.load %arg5[%c0_10, %c0_11] : memref<8x128xf32, #tpu.memory_space<vmem>>, vector<8x128xf32>
    tpu.vector_store %arg5[%c0_10, %c0_11], %25 {strides = array<i32>} : memref<8x128xf32, #tpu.memory_space<vmem>>, vector<8x128xf32>,
    return
  }
  func.func @transform_0(%arg0: i32) -> (i32, i32) {
    %c0_i32 = arith.constant 0 : i32
    %c0_i32_0 = arith.constant 0 : i32
    %c0_i32_1 = arith.constant 0 : i32
    return %c0_i32, %c0_i32_0 : i32, i32
  }
  func.func @transform_1(%arg0: i32) -> (i32, i32) {
    %c0_i32 = arith.constant 0 : i32
    %c0_i32_0 = arith.constant 0 : i32
    return %c0_i32, %arg0 : i32, i32
  }
  func.func @transform_2(%arg0: i32) -> (i32, i32) {
    %c0_i32 = arith.constant 0 : i32
    %c0_i32_0 = arith.constant 0 : i32
    return %c0_i32, %arg0 : i32, i32
  }
  func.func @transform_3(%arg0: i32) -> (i32, i32) {
    %c0_i32 = arith.constant 0 : i32
    %c0_i32_0 = arith.constant 0 : i32
    return %c0_i32, %arg0 : i32, i32
  }
  func.func @transform_4(%arg0: i32) -> (i32, i32) {
    %c0_i32 = arith.constant 0 : i32
    %c0_i32_0 = arith.constant 0 : i32
    return %c0_i32, %arg0 : i32, i32
  }
}

module attributes {stable_mosaic.version = 11 : i64} {
  func.func @decoder_core_kernel(%arg0: memref<8x32xf32, #tpu.memory_space<vmem>>, %arg1: memref<8x32xf32, #tpu.memory_space<vmem>>, %arg2: memref<8x8x32xf32, #tpu.memory_space<vmem>>, %arg3: memref<32x96xf32, #tpu.memory_space<vmem>>, %arg4: memref<32x96xf32, #tpu.memory_space<vmem>>, %arg5: memref<1x96xf32, #tpu.memory_space<vmem>>, %arg6: memref<1x96xf32, #tpu.memory_space<vmem>>, %arg7: memref<32x32xf32, #tpu.memory_space<vmem>>, %arg8: memref<32x32xf32, #tpu.memory_space<vmem>>, %arg9: memref<1x32xf32, #tpu.memory_space<vmem>>, %arg10: memref<8x32xf32, #tpu.memory_space<vmem>>, %arg11: memref<8x32xf32, #tpu.memory_space<vmem>>) attributes {dimension_semantics = [], scalar_prefetch = 0 : i64, scratch_operands = 0 : i64, tpu.core_type = #tpu.core_type<tc>} {
    %c0 = arith.constant 0 : index
    %c0_0 = arith.constant 0 : index
    %0 = vector.load %arg1[%c0, %c0_0] : memref<8x32xf32, #tpu.memory_space<vmem>>, vector<8x32xf32>
    %c0_1 = arith.constant 0 : index
    %c0_2 = arith.constant 0 : index
    %1 = vector.load %arg0[%c0_1, %c0_2] : memref<8x32xf32, #tpu.memory_space<vmem>>, vector<8x32xf32>
    %c0_3 = arith.constant 0 : index
    %c0_4 = arith.constant 0 : index
    %2 = vector.load %arg3[%c0_3, %c0_4] : memref<32x96xf32, #tpu.memory_space<vmem>>, vector<32x96xf32>
    %cst = arith.constant dense<0.000000e+00> : vector<8x96xf32>
    %3 = tpu.matmul %1, %2, %cst {dimension_numbers = #tpu.dot_dimension_numbers<[1], [0], [0], [1], [0, 0, 1, 1], [], []>} : vector<8x32xf32>, vector<32x96xf32>, vector<8x96xf32> -> vector<8x96xf32>
    %c0_5 = arith.constant 0 : index
    %c0_6 = arith.constant 0 : index
    %4 = vector.load %arg5[%c0_5, %c0_6] : memref<1x96xf32, #tpu.memory_space<vmem>>, vector<1x96xf32>
    %5 = vector.broadcast %4 : vector<1x96xf32> to vector<8x96xf32>
    %6 = arith.addf %3, %5 : vector<8x96xf32>
    %c0_7 = arith.constant 0 : index
    %c0_8 = arith.constant 0 : index
    %7 = vector.load %arg4[%c0_7, %c0_8] : memref<32x96xf32, #tpu.memory_space<vmem>>, vector<32x96xf32>
    %cst_9 = arith.constant dense<0.000000e+00> : vector<8x96xf32>
    %8 = tpu.matmul %0, %7, %cst_9 {dimension_numbers = #tpu.dot_dimension_numbers<[1], [0], [0], [1], [0, 0, 1, 1], [], []>} : vector<8x32xf32>, vector<32x96xf32>, vector<8x96xf32> -> vector<8x96xf32>
    %c0_10 = arith.constant 0 : index
    %c0_11 = arith.constant 0 : index
    %9 = vector.load %arg6[%c0_10, %c0_11] : memref<1x96xf32, #tpu.memory_space<vmem>>, vector<1x96xf32>
    %10 = vector.broadcast %9 : vector<1x96xf32> to vector<8x96xf32>
    %11 = arith.addf %8, %10 : vector<8x96xf32>
    %12 = vector.extract_strided_slice %6 {offsets = [0, 0], sizes = [8, 32], strides = [1, 1]} : vector<8x96xf32> to vector<8x32xf32>
    %13 = vector.extract_strided_slice %11 {offsets = [0, 0], sizes = [8, 32], strides = [1, 1]} : vector<8x96xf32> to vector<8x32xf32>
    %14 = arith.addf %12, %13 : vector<8x32xf32>
    %15 = arith.negf %14 : vector<8x32xf32>
    %16 = math.exp %15 : vector<8x32xf32>
    %cst_12 = arith.constant 1.000000e+00 : f32
    %17 = vector.broadcast %cst_12 : f32 to vector<8x32xf32>
    %18 = arith.addf %17, %16 : vector<8x32xf32>
    %19 = arith.divf %17, %18 : vector<8x32xf32>
    %20 = vector.extract_strided_slice %6 {offsets = [0, 32], sizes = [8, 32], strides = [1, 1]} : vector<8x96xf32> to vector<8x32xf32>
    %21 = vector.extract_strided_slice %11 {offsets = [0, 32], sizes = [8, 32], strides = [1, 1]} : vector<8x96xf32> to vector<8x32xf32>
    %22 = arith.addf %20, %21 : vector<8x32xf32>
    %23 = arith.negf %22 : vector<8x32xf32>
    %24 = math.exp %23 : vector<8x32xf32>
    %cst_13 = arith.constant 1.000000e+00 : f32
    %25 = vector.broadcast %cst_13 : f32 to vector<8x32xf32>
    %26 = arith.addf %25, %24 : vector<8x32xf32>
    %27 = arith.divf %25, %26 : vector<8x32xf32>
    %28 = vector.extract_strided_slice %6 {offsets = [0, 64], sizes = [8, 32], strides = [1, 1]} : vector<8x96xf32> to vector<8x32xf32>
    %29 = vector.extract_strided_slice %11 {offsets = [0, 64], sizes = [8, 32], strides = [1, 1]} : vector<8x96xf32> to vector<8x32xf32>
    %30 = arith.mulf %19, %29 : vector<8x32xf32>
    %31 = arith.addf %28, %30 : vector<8x32xf32>
    %32 = math.tanh %31 : vector<8x32xf32>
    %cst_14 = arith.constant 1.000000e+00 : f32
    %33 = vector.broadcast %cst_14 : f32 to vector<8x32xf32>
    %34 = arith.subf %33, %27 : vector<8x32xf32>
    %35 = arith.mulf %34, %32 : vector<8x32xf32>
    %36 = arith.mulf %27, %0 : vector<8x32xf32>
    %37 = arith.addf %35, %36 : vector<8x32xf32>
    %c0_15 = arith.constant 0 : index
    %c0_16 = arith.constant 0 : index
    %c0_17 = arith.constant 0 : index
    %38 = vector.load %arg2[%c0_15, %c0_16, %c0_17] : memref<8x8x32xf32, #tpu.memory_space<vmem>>, vector<8x8x32xf32>
    %39 = vector.shape_cast %37 : vector<8x32xf32> to vector<8x1x32xf32>
    "tpu.trace_start"() <{level = 10 : i32, message = "bqh,bsh->bqs"}> : () -> ()
    %cst_18 = arith.constant dense<0.000000e+00> : vector<8x1x8xf32>
    %40 = tpu.matmul %39, %38, %cst_18 {dimension_numbers = #tpu.dot_dimension_numbers<[2], [2], [1], [1], [0, 0, 0, 1, 1, 1], [0], [0]>} : vector<8x1x32xf32>, vector<8x8x32xf32>, vector<8x1x8xf32> -> vector<8x1x8xf32>
    "tpu.trace_stop"() : () -> ()
    %cst_19 = arith.constant dense<0xFF800000> : vector<8x1xf32>
    %41 = vector.multi_reduction <maximumf>, %40, %cst_19 [2] : vector<8x1x8xf32> to vector<8x1xf32>
    %42 = vector.shape_cast %41 : vector<8x1xf32> to vector<8x1x1xf32>
    %43 = vector.broadcast %42 : vector<8x1x1xf32> to vector<8x1x8xf32>
    %44 = arith.subf %40, %43 : vector<8x1x8xf32>
    %45 = math.exp %44 : vector<8x1x8xf32>
    %cst_20 = arith.constant dense<0.000000e+00> : vector<8x1xf32>
    %46 = vector.multi_reduction <add>, %45, %cst_20 [2] : vector<8x1x8xf32> to vector<8x1xf32>
    %47 = vector.shape_cast %46 : vector<8x1xf32> to vector<8x1x1xf32>
    %48 = tpu.reciprocal %47 : vector<8x1x1xf32> -> vector<8x1x1xf32>
    %49 = vector.broadcast %48 : vector<8x1x1xf32> to vector<8x1x8xf32>
    %50 = arith.mulf %45, %49 : vector<8x1x8xf32>
    "tpu.trace_start"() <{level = 10 : i32, message = "bqs,bsh->bqh"}> : () -> ()
    %cst_21 = arith.constant dense<0.000000e+00> : vector<8x1x32xf32>
    %51 = tpu.matmul %50, %38, %cst_21 {dimension_numbers = #tpu.dot_dimension_numbers<[2], [1], [1], [2], [0, 0, 0, 1, 1, 2], [0], [0]>} : vector<8x1x8xf32>, vector<8x8x32xf32>, vector<8x1x32xf32> -> vector<8x1x32xf32>
    "tpu.trace_stop"() : () -> ()
    %52 = vector.shape_cast %51 : vector<8x1x32xf32> to vector<8x32xf32>
    %c0_22 = arith.constant 0 : index
    %c0_23 = arith.constant 0 : index
    %53 = vector.load %arg7[%c0_22, %c0_23] : memref<32x32xf32, #tpu.memory_space<vmem>>, vector<32x32xf32>
    %cst_24 = arith.constant dense<0.000000e+00> : vector<8x32xf32>
    %54 = tpu.matmul %37, %53, %cst_24 {dimension_numbers = #tpu.dot_dimension_numbers<[1], [0], [0], [1], [0, 0, 1, 1], [], []>} : vector<8x32xf32>, vector<32x32xf32>, vector<8x32xf32> -> vector<8x32xf32>
    %c0_25 = arith.constant 0 : index
    %c0_26 = arith.constant 0 : index
    %55 = vector.load %arg8[%c0_25, %c0_26] : memref<32x32xf32, #tpu.memory_space<vmem>>, vector<32x32xf32>
    %cst_27 = arith.constant dense<0.000000e+00> : vector<8x32xf32>
    %56 = tpu.matmul %52, %55, %cst_27 {dimension_numbers = #tpu.dot_dimension_numbers<[1], [0], [0], [1], [0, 0, 1, 1], [], []>} : vector<8x32xf32>, vector<32x32xf32>, vector<8x32xf32> -> vector<8x32xf32>
    %57 = arith.addf %54, %56 : vector<8x32xf32>
    %c0_28 = arith.constant 0 : index
    %c0_29 = arith.constant 0 : index
    %58 = vector.load %arg9[%c0_28, %c0_29] : memref<1x32xf32, #tpu.memory_space<vmem>>, vector<1x32xf32>
    %59 = vector.broadcast %58 : vector<1x32xf32> to vector<8x32xf32>
    %60 = arith.addf %57, %59 : vector<8x32xf32>
    %61 = math.tanh %60 : vector<8x32xf32>
    %c0_30 = arith.constant 0 : index
    %c0_31 = arith.constant 0 : index
    %62 = vector.load %arg10[%c0_30, %c0_31] : memref<8x32xf32, #tpu.memory_space<vmem>>, vector<8x32xf32>
    tpu.vector_store %arg10[%c0_30, %c0_31], %61 {strides = array<i32>} : memref<8x32xf32, #tpu.memory_space<vmem>>, vector<8x32xf32>,
    %c0_32 = arith.constant 0 : index
    %c0_33 = arith.constant 0 : index
    %63 = vector.load %arg11[%c0_32, %c0_33] : memref<8x32xf32, #tpu.memory_space<vmem>>, vector<8x32xf32>
    tpu.vector_store %arg11[%c0_32, %c0_33], %37 {strides = array<i32>} : memref<8x32xf32, #tpu.memory_space<vmem>>, vector<8x32xf32>,
    return
  }
}

</mosaic_0001>

<llo_original>
// kernel: _decoder_step.3
$region0: #{_decoder_step.3}
  #allocation0 [shape = 'u32[]', space=smem, size = 0x4, offset = 0x4, fixed_abs, tag = 'smem constant byte address 0x4 - core index']
  #allocation1 [shape = 'u32[72,128]{1,0:T(1,128)}', space=vmem, size = 0x9000, scoped, tag = 'internal scratch']
  %s0 = inlined_call_operand.vmem [shape: f32[8,32], index: 0, kind: input, shape index: {}]
  %s1 = inlined_call_operand.vmem [shape: f32[32,128], index: 1, kind: input, shape index: {}]
  %s2 = inlined_call_operand.vmem [shape: f32[1,128], index: 2, kind: input, shape index: {}]
  %s3 = inlined_call_operand.vmem [shape: f32[8,128], index: 3, kind: output, shape index: {0}]
  %s4 = inlined_call_operand.vmem [shape: f32[8,128], index: 4, kind: output, shape index: {1}]
  %5 = xla_tuple %s3, %s4
  %s6 = sld [smem:[#allocation0]]
  $region30: #{_decoder_step.3} parent=0
    _
  %s8 = ssub.s32 1, %s6
  %s9 = scalar_select 0, %s8, %s6
  // Predicated region
  $region2: #{_decoder_step.3} parent=0 // pred_check
    _
  $region3: #{_decoder_step.3} parent=0 // pred_check_branch
    %11 = sbr.rel (0) target = $region5
  $region4: #{_decoder_step.3} parent=0 // pred_region
    _
  $region5: #{_decoder_step.3} parent=0 // pred_fallthru
    _
  // Predicated region
  $region6: #{_decoder_step.3} parent=0 // pred_check
    _
  $region7: #{_decoder_step.3} parent=0 // pred_check_branch
    %13 = sbr.rel (0) target = $region9
  $region8: #{_decoder_step.3} parent=0 // pred_region
    _
  $region9: #{_decoder_step.3} parent=0 // pred_fallthru
    _
  // Predicated region
  $region10: #{_decoder_step.3} parent=0 // pred_check
    _
  $region11: #{_decoder_step.3} parent=0 // pred_check_branch
    %15 = sbr.rel (0) target = $region13
  $region12: #{_decoder_step.3} parent=0 // pred_region
    _
  $region13: #{_decoder_step.3} parent=0 // pred_fallthru
    _
  %v16 = vld [vmem:[%s0] sm:$0xff]
  %v17 = vld [vmem:[%s1] sm:$0xff]
  %v18 = vld [vmem:[%s1 + $0x8] sm:$0xff]
  %v19 = vld [vmem:[%s1 + $0x10] sm:$0xff]
  %v20 = vld [vmem:[%s1 + $0x18] sm:$0xff]
  %v21 = vld [vmem:[%s2] sm:$0x1]
  %v23 = vperm.slane %v21, 0
  %vm25 = vcmask 261120
  %v27 = vsel %vm25, %v16, 0
  %29 = vmatpush.msra.mxu0 0.0
  %30 = vmatpush.msra.mxu0 0.0
  %31 = vmatpush.msra.mxu0 0.0
  %32 = vmatpush.msra.mxu0 0.0
  %33 = vmatpush.msra.mxu0 0.0
  %34 = vmatpush.msra.mxu0 0.0
  %35 = vmatpush.msra.mxu0 0.0
  %36 = vmatpush.msra.mxu0 0.0
  %37 = vmatpush.msra.mxu0 0.0
  %38 = vmatpush.msra.mxu0 0.0
  %39 = vmatpush.msra.mxu0 0.0
  %40 = vmatpush.msra.mxu0 0.0
  %41 = vmatpush.msra.mxu0 %v20
  %42 = vmatpush.msra.mxu0 %v19
  %43 = vmatpush.msra.mxu0 %v18
  %44 = vmatpush.msra.mxu0 %v17
  %45 = vmatmul.f32.gmra.mxu0 %v27
  %v46 = vpop.f32.mrf.mxu0
  %v47 = vadd.f32 %v23, %v46
  %48 = vdwg.mxu0
  %49 = vmax.xlane.f32.xlu0 %v47
  %v50 = vpop.xlane.xlu0 %49
  %v51 = vsub.f32 %v47, %v50
  %v52 = vmul.f32 %v51, 1.442695
  %v53 = vpow.pop %v52
  %54 = vst [vmem:[%s3] sm:$0xff] %v53
  %55 = vadd.xlane.f32.xlu0 %v53
  %v56 = vpop.xlane.xlu0 %55
  %v57 = vlaneseq
  %v58 = vand.u32 %v57, 127
  %vm59 = vcmp.eq.s32.totalorder %v58, 0
  %vm60 = vcmp.eq.s32.totalorder %v58, 1
  %v61 = vsel %vm60, %v56, 0.0
  %v62 = vsel %vm59, %v50, %v61
  %63 = vst [vmem:[%s4] sm:$0xff] %v62
  // Predicated region
  $region14: #{_decoder_step.3} parent=0 // pred_check
    _
  $region15: #{_decoder_step.3} parent=0 // pred_check_branch
    %65 = sbr.rel (0) target = $region17
  $region16: #{_decoder_step.3} parent=0 // pred_region
    _
  $region17: #{_decoder_step.3} parent=0 // pred_fallthru
    _
  // Predicated region
  $region18: #{_decoder_step.3} parent=0 // pred_check
    _
  $region19: #{_decoder_step.3} parent=0 // pred_check_branch
    %67 = sbr.rel (0) target = $region21
  $region20: #{_decoder_step.3} parent=0 // pred_region
    _
  $region21: #{_decoder_step.3} parent=0 // pred_fallthru
    _
  // Predicated region
  $region22: #{_decoder_step.3} parent=0 // pred_check
    _
  $region23: #{_decoder_step.3} parent=0 // pred_check_branch
    %69 = sbr.rel (0) target = $region25
  $region24: #{_decoder_step.3} parent=0 // pred_region
    _
  $region25: #{_decoder_step.3} parent=0 // pred_fallthru
    _
  // Predicated region
  $region26: #{_decoder_step.3} parent=0 // pred_check
    _
  $region27: #{_decoder_step.3} parent=0 // pred_check_branch
    %71 = sbr.rel (0) target = $region29
  $region28: #{_decoder_step.3} parent=0 // pred_region
    _
  $region29: #{_decoder_step.3} parent=0 // pred_fallthru
    _

// kernel: _decoder_step.2
$region0: #{_decoder_step.2}
  #allocation0 [shape = 'u32[]', space=smem, size = 0x4, offset = 0x4, fixed_abs, tag = 'smem constant byte address 0x4 - core index']
  #allocation1 [shape = 'u32[72,128]{1,0:T(1,128)}', space=vmem, size = 0x9000, scoped, tag = 'internal scratch']
  %s0 = inlined_call_operand.vmem [shape: f32[8,32], index: 0, kind: input, shape index: {}]
  %s1 = inlined_call_operand.vmem [shape: f32[8,32], index: 1, kind: input, shape index: {}, may-alias: {1,11}]
  %s2 = inlined_call_operand.vmem [shape: f32[8,8,32], index: 2, kind: input, shape index: {}]
  %s3 = inlined_call_operand.vmem [shape: f32[32,96], index: 3, kind: input, shape index: {}]
  %s4 = inlined_call_operand.vmem [shape: f32[32,96], index: 4, kind: input, shape index: {}]
  %s5 = inlined_call_operand.vmem [shape: f32[1,96], index: 5, kind: input, shape index: {}]
  %s6 = inlined_call_operand.vmem [shape: f32[1,96], index: 6, kind: input, shape index: {}]
  %s7 = inlined_call_operand.vmem [shape: f32[32,32], index: 7, kind: input, shape index: {}]
  %s8 = inlined_call_operand.hbm [shape: f32[32,32], index: 8, kind: input, shape index: {}]
  %s9 = inlined_call_operand.vmem [shape: f32[1,32], index: 9, kind: input, shape index: {}]
  %s10 = inlined_call_operand.vmem [shape: f32[8,32], index: 10, kind: output, shape index: {0}]
  %s11 = inlined_call_operand.vmem [shape: f32[8,32], index: 11, kind: output, shape index: {1}, may-alias: {1,11}]
  %12 = xla_tuple %s10, %s11
  %s13 = sld [smem:[#allocation0]]
  $region62: #{_decoder_step.2} parent=0
    _
  %s15 = ssub.s32 1, %s13
  %s16 = scalar_select 0, %s15, %s13
  $region1: #{_decoder_step.2} parent=0
    #allocation2 [shape = 'u8[16384]{0}', space=vmem, size = 0x4000, scoped, tag = 'input window, operand 8, single buffered']
    #allocation3 [shape = 's32[1]{0}', space=sflag, size = 0x4, scoped, tag = 'scoped memory for _decoder_step.2']
    %17 = vsyncpa [#allocation3], 0
    // Predicated region
    $region2: #{_decoder_step.2} parent=1 // pred_check
      _
    $region3: #{_decoder_step.2} parent=1 // pred_check_branch
      %19 = sbr.rel (0) target = $region5
    $region4: #{_decoder_step.2} parent=1 // pred_region
      _
    $region5: #{_decoder_step.2} parent=1 // pred_fallthru
      _
    // Predicated region
    $region6: #{_decoder_step.2} parent=1 // pred_check
      _
    $region7: #{_decoder_step.2} parent=1 // pred_check_branch
      %21 = sbr.rel (0) target = $region9
    $region8: #{_decoder_step.2} parent=1 // pred_region
      _
    $region9: #{_decoder_step.2} parent=1 // pred_fallthru
      _
    // Predicated region
    $region10: #{_decoder_step.2} parent=1 // pred_check
      _
    $region11: #{_decoder_step.2} parent=1 // pred_check_branch
      %23 = sbr.rel (0) target = $region13
    $region12: #{_decoder_step.2} parent=1 // pred_region
      _
    $region13: #{_decoder_step.2} parent=1 // pred_fallthru
      _
    // Predicated region
    $region14: #{_decoder_step.2} parent=1 // pred_check
      _
    $region15: #{_decoder_step.2} parent=1 // pred_check_branch
      %25 = sbr.rel (0) target = $region17
    $region16: #{_decoder_step.2} parent=1 // pred_region
      _
    $region17: #{_decoder_step.2} parent=1 // pred_fallthru
      _
    // Predicated region
    $region18: #{_decoder_step.2} parent=1 // pred_check
      _
    $region19: #{_decoder_step.2} parent=1 // pred_check_branch
      %27 = sbr.rel (0) target = $region21
    $region20: #{_decoder_step.2} parent=1 // pred_region
      _
    $region21: #{_decoder_step.2} parent=1 // pred_fallthru
      _
    // Predicated region
    $region22: #{_decoder_step.2} parent=1 // pred_check
      _
    $region23: #{_decoder_step.2} parent=1 // pred_check_branch
      %29 = sbr.rel (0) target = $region25
    $region24: #{_decoder_step.2} parent=1 // pred_region
      _
    $region25: #{_decoder_step.2} parent=1 // pred_fallthru
      _
    // Predicated region
    $region26: #{_decoder_step.2} parent=1 // pred_check
      _
    $region27: #{_decoder_step.2} parent=1 // pred_check_branch
      %31 = sbr.rel (0) target = $region29
    $region28: #{_decoder_step.2} parent=1 // pred_region
      _
    $region29: #{_decoder_step.2} parent=1 // pred_fallthru
      _
    // Predicated region
    $region30: #{_decoder_step.2} parent=1 // pred_check
      _
    $region31: #{_decoder_step.2} parent=1 // pred_check_branch
      %33 = sbr.rel (0) target = $region33
    $region32: #{_decoder_step.2} parent=1 // pred_region
      _
    $region33: #{_decoder_step.2} parent=1 // pred_fallthru
      _
    // Predicated region
    $region34: #{_decoder_step.2} parent=1 // pred_check
      _
    $region35: #{_decoder_step.2} parent=1 // pred_check_branch
      %35 = sbr.rel (0) target = $region37
    $region36: #{_decoder_step.2} parent=1 // pred_region
      %37 = vsyncadd [#allocation3], 0
      %s38 = sshll.u32 %s8, 4
      %s39 = int_to_ptr.hbm [resolvable:$true] %s38
      %s40 = sshll.u32 [#allocation2], 4
      %s41 = int_to_ptr.vmem [resolvable:$true] %s40
      %46 = dma.hbm_to_vmem [thread:$0]  %s39, 512, %s41, [#allocation3], 128, 128, 8
    $region37: #{_decoder_step.2} parent=1 // pred_fallthru
      _
    // Predicated region
    $region38: #{_decoder_step.2} parent=1 // pred_check
      _
    $region39: #{_decoder_step.2} parent=1 // pred_check_branch
      %48 = sbr.rel (0) target = $region41
    $region40: #{_decoder_step.2} parent=1 // pred_region
      _
    $region41: #{_decoder_step.2} parent=1 // pred_fallthru
      _
    // Predicated region
    $region42: #{_decoder_step.2} parent=1 // pred_check
      _
    $region43: #{_decoder_step.2} parent=1 // pred_check_branch
      %50 = sbr.rel (0) target = $region45
    $region44: #{_decoder_step.2} parent=1 // pred_region
      %52 = dma.done [#allocation3], 512
    $region45: #{_decoder_step.2} parent=1 // pred_fallthru
      _
    %v53 = vld [vmem:[%s1] sm:$0xff]
    %v54 = vld [vmem:[%s0] sm:$0xff]
    %v55 = vld [vmem:[%s3] sm:$0xff]
    %v56 = vld [vmem:[%s3 + $0x8] sm:$0xff]
    %v57 = vld [vmem:[%s3 + $0x10] sm:$0xff]
    %v58 = vld [vmem:[%s3 + $0x18] sm:$0xff]
    %v59 = vld [vmem:[%s5] sm:$0x1]
    %v61 = vperm.slane %v59, 0
    %vm63 = vcmask 261120
    %v65 = vsel %vm63, %v54, 0
    %67 = vmatpush.msra.mxu0 0.0
    %68 = vmatpush.msra.mxu0 0.0
    %69 = vmatpush.msra.mxu0 0.0
    %70 = vmatpush.msra.mxu0 0.0
    %71 = vmatpush.msra.mxu0 0.0
    %72 = vmatpush.msra.mxu0 0.0
    %73 = vmatpush.msra.mxu0 0.0
    %74 = vmatpush.msra.mxu0 0.0
    %75 = vmatpush.msra.mxu0 0.0
    %76 = vmatpush.msra.mxu0 0.0
    %77 = vmatpush.msra.mxu0 0.0
    %78 = vmatpush.msra.mxu0 0.0
    %79 = vmatpush.msra.mxu0 %v58
    %80 = vmatpush.msra.mxu0 %v57
    %81 = vmatpush.msra.mxu0 %v56
    %82 = vmatpush.msra.mxu0 %v55
    %83 = vmatmul.f32.gmra.mxu0 %v65
    %v84 = vpop.f32.mrf.mxu0
    %v85 = vadd.f32 %v61, %v84
    %86 = vdwg.mxu0
    %v87 = vld [vmem:[%s4] sm:$0xff]
    %v88 = vld [vmem:[%s4 + $0x8] sm:$0xff]
    %v89 = vld [vmem:[%s4 + $0x10] sm:$0xff]
    %v90 = vld [vmem:[%s4 + $0x18] sm:$0xff]
    %v91 = vld [vmem:[%s6] sm:$0x1]
    %v93 = vperm.slane %v91, 0
    %v96 = vsel %vm63, %v53, 0
    %98 = vmatpush.msra.mxu0 0.0
    %99 = vmatpush.msra.mxu0 0.0
    %100 = vmatpush.msra.mxu0 0.0
    %101 = vmatpush.msra.mxu0 0.0
    %102 = vmatpush.msra.mxu0 0.0
    %103 = vmatpush.msra.mxu0 0.0
    %104 = vmatpush.msra.mxu0 0.0
    %105 = vmatpush.msra.mxu0 0.0
    %106 = vmatpush.msra.mxu0 0.0
    %107 = vmatpush.msra.mxu0 0.0
    %108 = vmatpush.msra.mxu0 0.0
    %109 = vmatpush.msra.mxu0 0.0
    %110 = vmatpush.msra.mxu0 %v90
    %111 = vmatpush.msra.mxu0 %v89
    %112 = vmatpush.msra.mxu0 %v88
    %113 = vmatpush.msra.mxu0 %v87
    %114 = vmatmul.f32.gmra.mxu0 %v96
    %v115 = vpop.f32.mrf.mxu0
    %v116 = vadd.f32 %v93, %v115
    %117 = vdwg.mxu0
    %v118 = vadd.f32 %v85, %v116
    %v119 = vxor.u32 %v118, 2147483648
    %v120 = vmul.f32 %v119, 1.442695
    %v121 = vpow.pop %v120
    %v122 = vadd.f32 %v121, 1.0
    %v123 = vrcp.pop %v122
    %v124 = vmul.f32 %v122, %v123
    %v125 = vsub.f32 1.0, %v124
    %v126 = vmul.f32 %v123, %v125
    %v127 = vadd.f32 %v123, %v126
    %vm128 = vweird.f32 %v122
    %vm129 = vweird.f32 %v123
    %vm130 = vmor %vm128, %vm129
    %v131 = vsel %vm130, %v123, %v127
    %v132 = vand.u32 2147483647, %v122
    %vm133 = vcmp.eq.f32.partialorder %v132, 8.507059e+37
    %v134 = vand.u32 %v122, 2147483648
    %v135 = vor.u32 1.1754944e-38, %v134
    %v136 = vsel %vm133, %v135, %v131
    %v137 = vmul.f32 1.0, %v136
    %139 = vrot.lane.b32.xlu0 %v116, 64
    %v140 = vpop.permute.xlu0 %139
    %v142 = vmul.f32 %v137, %v140
    %144 = vrot.lane.b32.xlu0 %v142, 64
    %v145 = vpop.permute.xlu0 %144
    %v147 = vadd.f32 %v85, %v145
    %v148 = vtanh.pop %v147
    %v149 = vsub.f32 1.0, %v137
    %151 = vrot.lane.b32.xlu0 %v148, 96
    %v152 = vpop.permute.xlu0 %151
    %v154 = vmul.f32 %v149, %v152
    %155 = vrot.lane.b32.xlu0 %v53, 32
    %v156 = vpop.permute.xlu0 %155
    %v158 = vmul.f32 %v137, %v156
    %v159 = vadd.f32 %v154, %v158
    %v160 = vld [vmem:[%s2] sm:$0xff]
    %v161 = vld [vmem:[%s2 + $0x8] sm:$0xff]
    %v162 = vld [vmem:[%s2 + $0x10] sm:$0xff]
    %v163 = vld [vmem:[%s2 + $0x18] sm:$0xff]
    %v164 = vld [vmem:[%s2 + $0x20] sm:$0xff]
    %v165 = vld [vmem:[%s2 + $0x28] sm:$0xff]
    %v166 = vld [vmem:[%s2 + $0x30] sm:$0xff]
    %v167 = vld [vmem:[%s2 + $0x38] sm:$0xff]
    %v169 = vrot.slane %v159, 1
    %v170 = vrot.slane %v159, 2
    %v171 = vrot.slane %v159, 3
    %v172 = vrot.slane %v159, 4
    %v173 = vrot.slane %v159, 5
    %v174 = vrot.slane %v159, 6
    %v175 = vrot.slane %v159, 7
    %v176 = vperm.slane %v159, 0
    %177 = vrot.lane.b32.xlu0 %v176, 96
    %v178 = vpop.permute.xlu0 %177
    %v179 = vsel %vm63, %v178, 0
    %v182 = vsel %vm63, %v160, 0
    %184 = vmatpush.xpose.msra.mxu0 0.0
    %185 = vmatpush.xpose.msra.mxu0 0.0
    %186 = vmatpush.xpose.msra.mxu0 0.0
    %187 = vmatpush.xpose.msra.mxu0 0.0
    %188 = vmatpush.xpose.msra.mxu0 0.0
    %189 = vmatpush.xpose.msra.mxu0 0.0
    %190 = vmatpush.xpose.msra.mxu0 0.0
    %191 = vmatpush.xpose.msra.mxu0 0.0
    %192 = vmatpush.xpose.msra.mxu0 0.0
    %193 = vmatpush.xpose.msra.mxu0 0.0
    %194 = vmatpush.xpose.msra.mxu0 0.0
    %195 = vmatpush.xpose.msra.mxu0 0.0
    %196 = vmatpush.xpose.msra.mxu0 0.0
    %197 = vmatpush.xpose.msra.mxu0 0.0
    %198 = vmatpush.xpose.msra.mxu0 0.0
    %199 = vmatpush.xpose.msra.mxu0 %v182
    %200 = vmatmul.f32.gmra.mxu0 %v179
    %v201 = vpop.f32.mrf.mxu0
    %v202 = vadd.f32 0.0, %v201
    %203 = vdwg.mxu0
    %v204 = vperm.slane %v169, 0
    %205 = vrot.lane.b32.xlu0 %v204, 96
    %v206 = vpop.permute.xlu0 %205
    %v207 = vsel %vm63, %v206, 0
    %v210 = vsel %vm63, %v161, 0
    %212 = vmatpush.xpose.msra.mxu0 0.0
    %213 = vmatpush.xpose.msra.mxu0 0.0
    %214 = vmatpush.xpose.msra.mxu0 0.0
    %215 = vmatpush.xpose.msra.mxu0 0.0
    %216 = vmatpush.xpose.msra.mxu0 0.0
    %217 = vmatpush.xpose.msra.mxu0 0.0
    %218 = vmatpush.xpose.msra.mxu0 0.0
    %219 = vmatpush.xpose.msra.mxu0 0.0
    %220 = vmatpush.xpose.msra.mxu0 0.0
    %221 = vmatpush.xpose.msra.mxu0 0.0
    %222 = vmatpush.xpose.msra.mxu0 0.0
    %223 = vmatpush.xpose.msra.mxu0 0.0
    %224 = vmatpush.xpose.msra.mxu0 0.0
    %225 = vmatpush.xpose.msra.mxu0 0.0
    %226 = vmatpush.xpose.msra.mxu0 0.0
    %227 = vmatpush.xpose.msra.mxu0 %v210
    %228 = vmatmul.f32.gmra.mxu0 %v207
    %v229 = vpop.f32.mrf.mxu0
    %v230 = vadd.f32 0.0, %v229
    %231 = vdwg.mxu0
    %v232 = vperm.slane %v170, 0
    %233 = vrot.lane.b32.xlu0 %v232, 96
    %v234 = vpop.permute.xlu0 %233
    %v235 = vsel %vm63, %v234, 0
    %v238 = vsel %vm63, %v162, 0
    %240 = vmatpush.xpose.msra.mxu0 0.0
    %241 = vmatpush.xpose.msra.mxu0 0.0
    %242 = vmatpush.xpose.msra.mxu0 0.0
    %243 = vmatpush.xpose.msra.mxu0 0.0
    %244 = vmatpush.xpose.msra.mxu0 0.0
    %245 = vmatpush.xpose.msra.mxu0 0.0
    %246 = vmatpush.xpose.msra.mxu0 0.0
    %247 = vmatpush.xpose.msra.mxu0 0.0
    %248 = vmatpush.xpose.msra.mxu0 0.0
    %249 = vmatpush.xpose.msra.mxu0 0.0
    %250 = vmatpush.xpose.msra.mxu0 0.0
    %251 = vmatpush.xpose.msra.mxu0 0.0
    %252 = vmatpush.xpose.msra.mxu0 0.0
    %253 = vmatpush.xpose.msra.mxu0 0.0
    %254 = vmatpush.xpose.msra.mxu0 0.0
    %255 = vmatpush.xpose.msra.mxu0 %v238
    %256 = vmatmul.f32.gmra.mxu0 %v235
    %v257 = vpop.f32.mrf.mxu0
    %v258 = vadd.f32 0.0, %v257
    %259 = vdwg.mxu0
    %v260 = vperm.slane %v171, 0
    %261 = vrot.lane.b32.xlu0 %v260, 96
    %v262 = vpop.permute.xlu0 %261
    %v263 = vsel %vm63, %v262, 0
    %v266 = vsel %vm63, %v163, 0
    %268 = vmatpush.xpose.msra.mxu0 0.0
    %269 = vmatpush.xpose.msra.mxu0 0.0
    %270 = vmatpush.xpose.msra.mxu0 0.0
    %271 = vmatpush.xpose.msra.mxu0 0.0
    %272 = vmatpush.xpose.msra.mxu0 0.0
    %273 = vmatpush.xpose.msra.mxu0 0.0
    %274 = vmatpush.xpose.msra.mxu0 0.0
    %275 = vmatpush.xpose.msra.mxu0 0.0
    %276 = vmatpush.xpose.msra.mxu0 0.0
    %277 = vmatpush.xpose.msra.mxu0 0.0
    %278 = vmatpush.xpose.msra.mxu0 0.0
    %279 = vmatpush.xpose.msra.mxu0 0.0
    %280 = vmatpush.xpose.msra.mxu0 0.0
    %281 = vmatpush.xpose.msra.mxu0 0.0
    %282 = vmatpush.xpose.msra.mxu0 0.0
    %283 = vmatpush.xpose.msra.mxu0 %v266
    %284 = vmatmul.f32.gmra.mxu0 %v263
    %v285 = vpop.f32.mrf.mxu0
    %v286 = vadd.f32 0.0, %v285
    %287 = vdwg.mxu0
    %v288 = vperm.slane %v172, 0
    %289 = vrot.lane.b32.xlu0 %v288, 96
    %v290 = vpop.permute.xlu0 %289
    %v291 = vsel %vm63, %v290, 0
    %v294 = vsel %vm63, %v164, 0
    %296 = vmatpush.xpose.msra.mxu0 0.0
    %297 = vmatpush.xpose.msra.mxu0 0.0
    %298 = vmatpush.xpose.msra.mxu0 0.0
    %299 = vmatpush.xpose.msra.mxu0 0.0
    %300 = vmatpush.xpose.msra.mxu0 0.0
    %301 = vmatpush.xpose.msra.mxu0 0.0
    %302 = vmatpush.xpose.msra.mxu0 0.0
    %303 = vmatpush.xpose.msra.mxu0 0.0
    %304 = vmatpush.xpose.msra.mxu0 0.0
    %305 = vmatpush.xpose.msra.mxu0 0.0
    %306 = vmatpush.xpose.msra.mxu0 0.0
    %307 = vmatpush.xpose.msra.mxu0 0.0
    %308 = vmatpush.xpose.msra.mxu0 0.0
    %309 = vmatpush.xpose.msra.mxu0 0.0
    %310 = vmatpush.xpose.msra.mxu0 0.0
    %311 = vmatpush.xpose.msra.mxu0 %v294
    %312 = vmatmul.f32.gmra.mxu0 %v291
    %v313 = vpop.f32.mrf.mxu0
    %v314 = vadd.f32 0.0, %v313
    %315 = vdwg.mxu0
    %v316 = vperm.slane %v173, 0
    %317 = vrot.lane.b32.xlu0 %v316, 96
    %v318 = vpop.permute.xlu0 %317
    %v319 = vsel %vm63, %v318, 0
    %v322 = vsel %vm63, %v165, 0
    %324 = vmatpush.xpose.msra.mxu0 0.0
    %325 = vmatpush.xpose.msra.mxu0 0.0
    %326 = vmatpush.xpose.msra.mxu0 0.0
    %327 = vmatpush.xpose.msra.mxu0 0.0
    %328 = vmatpush.xpose.msra.mxu0 0.0
    %329 = vmatpush.xpose.msra.mxu0 0.0
    %330 = vmatpush.xpose.msra.mxu0 0.0
    %331 = vmatpush.xpose.msra.mxu0 0.0
    %332 = vmatpush.xpose.msra.mxu0 0.0
    %333 = vmatpush.xpose.msra.mxu0 0.0
    %334 = vmatpush.xpose.msra.mxu0 0.0
    %335 = vmatpush.xpose.msra.mxu0 0.0
    %336 = vmatpush.xpose.msra.mxu0 0.0
    %337 = vmatpush.xpose.msra.mxu0 0.0
    %338 = vmatpush.xpose.msra.mxu0 0.0
    %339 = vmatpush.xpose.msra.mxu0 %v322
    %340 = vmatmul.f32.gmra.mxu0 %v319
    %v341 = vpop.f32.mrf.mxu0
    %v342 = vadd.f32 0.0, %v341
    %343 = vdwg.mxu0
    %v344 = vperm.slane %v174, 0
    %345 = vrot.lane.b32.xlu0 %v344, 96
    %v346 = vpop.permute.xlu0 %345
    %v347 = vsel %vm63, %v346, 0
    %v350 = vsel %vm63, %v166, 0
    %352 = vmatpush.xpose.msra.mxu0 0.0
    %353 = vmatpush.xpose.msra.mxu0 0.0
    %354 = vmatpush.xpose.msra.mxu0 0.0
    %355 = vmatpush.xpose.msra.mxu0 0.0
    %356 = vmatpush.xpose.msra.mxu0 0.0
    %357 = vmatpush.xpose.msra.mxu0 0.0
    %358 = vmatpush.xpose.msra.mxu0 0.0
    %359 = vmatpush.xpose.msra.mxu0 0.0
    %360 = vmatpush.xpose.msra.mxu0 0.0
    %361 = vmatpush.xpose.msra.mxu0 0.0
    %362 = vmatpush.xpose.msra.mxu0 0.0
    %363 = vmatpush.xpose.msra.mxu0 0.0
    %364 = vmatpush.xpose.msra.mxu0 0.0
    %365 = vmatpush.xpose.msra.mxu0 0.0
    %366 = vmatpush.xpose.msra.mxu0 0.0
    %367 = vmatpush.xpose.msra.mxu0 %v350
    %368 = vmatmul.f32.gmra.mxu0 %v347
    %v369 = vpop.f32.mrf.mxu0
    %v370 = vadd.f32 0.0, %v369
    %371 = vdwg.mxu0
    %v372 = vperm.slane %v175, 0
    %373 = vrot.lane.b32.xlu0 %v372, 96
    %v374 = vpop.permute.xlu0 %373
    %v375 = vsel %vm63, %v374, 0
    %v378 = vsel %vm63, %v167, 0
    %380 = vmatpush.xpose.msra.mxu0 0.0
    %381 = vmatpush.xpose.msra.mxu0 0.0
    %382 = vmatpush.xpose.msra.mxu0 0.0
    %383 = vmatpush.xpose.msra.mxu0 0.0
    %384 = vmatpush.xpose.msra.mxu0 0.0
    %385 = vmatpush.xpose.msra.mxu0 0.0
    %386 = vmatpush.xpose.msra.mxu0 0.0
    %387 = vmatpush.xpose.msra.mxu0 0.0
    %388 = vmatpush.xpose.msra.mxu0 0.0
    %389 = vmatpush.xpose.msra.mxu0 0.0
    %390 = vmatpush.xpose.msra.mxu0 0.0
    %391 = vmatpush.xpose.msra.mxu0 0.0
    %392 = vmatpush.xpose.msra.mxu0 0.0
    %393 = vmatpush.xpose.msra.mxu0 0.0
    %394 = vmatpush.xpose.msra.mxu0 0.0
    %395 = vmatpush.xpose.msra.mxu0 %v378
    %396 = vmatmul.f32.gmra.mxu0 %v375
    %v397 = vpop.f32.mrf.mxu0
    %v398 = vadd.f32 0.0, %v397
    %399 = vdwg.mxu0
    %vm400 = vcmask 57344
    %v401 = vsel %vm400, %v202, -inf
    %402 = vmax.xlane.f32.xlu0 %v401
    %v403 = vpop.xlane.xlu0 %402
    %v404 = vsel %vm400, %v230, -inf
    %405 = vmax.xlane.f32.xlu0 %v404
    %v406 = vpop.xlane.xlu0 %405
    %v407 = vsel %vm400, %v258, -inf
    %408 = vmax.xlane.f32.xlu0 %v407
    %v409 = vpop.xlane.xlu0 %408
    %v410 = vsel %vm400, %v286, -inf
    %411 = vmax.xlane.f32.xlu0 %v410
    %v412 = vpop.xlane.xlu0 %411
    %v413 = vsel %vm400, %v314, -inf
    %414 = vmax.xlane.f32.xlu0 %v413
    %v415 = vpop.xlane.xlu0 %414
    %v416 = vsel %vm400, %v342, -inf
    %417 = vmax.xlane.f32.xlu0 %v416
    %v418 = vpop.xlane.xlu0 %417
    %v419 = vsel %vm400, %v370, -inf
    %420 = vmax.xlane.f32.xlu0 %v419
    %v421 = vpop.xlane.xlu0 %420
    %v422 = vsel %vm400, %v398, -inf
    %423 = vmax.xlane.f32.xlu0 %v422
    %v424 = vpop.xlane.xlu0 %423
    %v425 = vsub.f32 %v202, %v403
    %v426 = vsub.f32 %v230, %v406
    %v427 = vsub.f32 %v258, %v409
    %v428 = vsub.f32 %v286, %v412
    %v429 = vsub.f32 %v314, %v415
    %v430 = vsub.f32 %v342, %v418
    %v431 = vsub.f32 %v370, %v421
    %v432 = vsub.f32 %v398, %v424
    %v433 = vmul.f32 %v425, 1.442695
    %v434 = vpow.pop %v433
    %v435 = vmul.f32 %v426, 1.442695
    %v436 = vpow.pop %v435
    %v437 = vmul.f32 %v427, 1.442695
    %v438 = vpow.pop %v437
    %v439 = vmul.f32 %v428, 1.442695
    %v440 = vpow.pop %v439
    %v441 = vmul.f32 %v429, 1.442695
    %v442 = vpow.pop %v441
    %v443 = vmul.f32 %v430, 1.442695
    %v444 = vpow.pop %v443
    %v445 = vmul.f32 %v431, 1.442695
    %v446 = vpow.pop %v445
    %v447 = vmul.f32 %v432, 1.442695
    %v448 = vpow.pop %v447
    %v449 = vsel %vm400, %v434, 0.0
    %450 = vadd.xlane.f32.xlu0 %v449
    %v451 = vpop.xlane.xlu0 %450
    %v452 = vsel %vm400, %v436, 0.0
    %453 = vadd.xlane.f32.xlu0 %v452
    %v454 = vpop.xlane.xlu0 %453
    %v455 = vsel %vm400, %v438, 0.0
    %456 = vadd.xlane.f32.xlu0 %v455
    %v457 = vpop.xlane.xlu0 %456
    %v458 = vsel %vm400, %v440, 0.0
    %459 = vadd.xlane.f32.xlu0 %v458
    %v460 = vpop.xlane.xlu0 %459
    %v461 = vsel %vm400, %v442, 0.0
    %462 = vadd.xlane.f32.xlu0 %v461
    %v463 = vpop.xlane.xlu0 %462
    %v464 = vsel %vm400, %v444, 0.0
    %465 = vadd.xlane.f32.xlu0 %v464
    %v466 = vpop.xlane.xlu0 %465
    %v467 = vsel %vm400, %v446, 0.0
    %468 = vadd.xlane.f32.xlu0 %v467
    %v469 = vpop.xlane.xlu0 %468
    %v470 = vsel %vm400, %v448, 0.0
    %471 = vadd.xlane.f32.xlu0 %v470
    %v472 = vpop.xlane.xlu0 %471
    %v473 = vrcp.pop %v451
    %v474 = vmul.f32 %v451, %v473
    %v475 = vsub.f32 1.0, %v474
    %v476 = vmul.f32 %v473, %v475
    %v477 = vadd.f32 %v473, %v476
    %vm478 = vweird.f32 %v451
    %vm479 = vweird.f32 %v473
    %vm480 = vmor %vm478, %vm479
    %v481 = vsel %vm480, %v473, %v477
    %v482 = vand.u32 2147483647, %v451
    %vm483 = vcmp.eq.f32.partialorder %v482, 8.507059e+37
    %v484 = vand.u32 %v451, 2147483648
    %v485 = vor.u32 1.1754944e-38, %v484
    %v486 = vsel %vm483, %v485, %v481
    %v487 = vrcp.pop %v454
    %v488 = vmul.f32 %v454, %v487
    %v489 = vsub.f32 1.0, %v488
    %v490 = vmul.f32 %v487, %v489
    %v491 = vadd.f32 %v487, %v490
    %vm492 = vweird.f32 %v454
    %vm493 = vweird.f32 %v487
    %vm494 = vmor %vm492, %vm493
    %v495 = vsel %vm494, %v487, %v491
    %v496 = vand.u32 2147483647, %v454
    %vm497 = vcmp.eq.f32.partialorder %v496, 8.507059e+37
    %v498 = vand.u32 %v454, 2147483648
    %v499 = vor.u32 1.1754944e-38, %v498
    %v500 = vsel %vm497, %v499, %v495
    %v501 = vrcp.pop %v457
    %v502 = vmul.f32 %v457, %v501
    %v503 = vsub.f32 1.0, %v502
    %v504 = vmul.f32 %v501, %v503
    %v505 = vadd.f32 %v501, %v504
    %vm506 = vweird.f32 %v457
    %vm507 = vweird.f32 %v501
    %vm508 = vmor %vm506, %vm507
    %v509 = vsel %vm508, %v501, %v505
    %v510 = vand.u32 2147483647, %v457
    %vm511 = vcmp.eq.f32.partialorder %v510, 8.507059e+37
    %v512 = vand.u32 %v457, 2147483648
    %v513 = vor.u32 1.1754944e-38, %v512
    %v514 = vsel %vm511, %v513, %v509
    %v515 = vrcp.pop %v460
    %v516 = vmul.f32 %v460, %v515
    %v517 = vsub.f32 1.0, %v516
    %v518 = vmul.f32 %v515, %v517
    %v519 = vadd.f32 %v515, %v518
    %vm520 = vweird.f32 %v460
    %vm521 = vweird.f32 %v515
    %vm522 = vmor %vm520, %vm521
    %v523 = vsel %vm522, %v515, %v519
    %v524 = vand.u32 2147483647, %v460
    %vm525 = vcmp.eq.f32.partialorder %v524, 8.507059e+37
    %v526 = vand.u32 %v460, 2147483648
    %v527 = vor.u32 1.1754944e-38, %v526
    %v528 = vsel %vm525, %v527, %v523
    %v529 = vrcp.pop %v463
    %v530 = vmul.f32 %v463, %v529
    %v531 = vsub.f32 1.0, %v530
    %v532 = vmul.f32 %v529, %v531
    %v533 = vadd.f32 %v529, %v532
    %vm534 = vweird.f32 %v463
    %vm535 = vweird.f32 %v529
    %vm536 = vmor %vm534, %vm535
    %v537 = vsel %vm536, %v529, %v533
    %v538 = vand.u32 2147483647, %v463
    %vm539 = vcmp.eq.f32.partialorder %v538, 8.507059e+37
    %v540 = vand.u32 %v463, 2147483648
    %v541 = vor.u32 1.1754944e-38, %v540
    %v542 = vsel %vm539, %v541, %v537
    %v543 = vrcp.pop %v466
    %v544 = vmul.f32 %v466, %v543
    %v545 = vsub.f32 1.0, %v544
    %v546 = vmul.f32 %v543, %v545
    %v547 = vadd.f32 %v543, %v546
    %vm548 = vweird.f32 %v466
    %vm549 = vweird.f32 %v543
    %vm550 = vmor %vm548, %vm549
    %v551 = vsel %vm550, %v543, %v547
    %v552 = vand.u32 2147483647, %v466
    %vm553 = vcmp.eq.f32.partialorder %v552, 8.507059e+37
    %v554 = vand.u32 %v466, 2147483648
    %v555 = vor.u32 1.1754944e-38, %v554
    %v556 = vsel %vm553, %v555, %v551
    %v557 = vrcp.pop %v469
    %v558 = vmul.f32 %v469, %v557
    %v559 = vsub.f32 1.0, %v558
    %v560 = vmul.f32 %v557, %v559
    %v561 = vadd.f32 %v557, %v560
    %vm562 = vweird.f32 %v469
    %vm563 = vweird.f32 %v557
    %vm564 = vmor %vm562, %vm563
    %v565 = vsel %vm564, %v557, %v561
    %v566 = vand.u32 2147483647, %v469
    %vm567 = vcmp.eq.f32.partialorder %v566, 8.507059e+37
    %v568 = vand.u32 %v469, 2147483648
    %v569 = vor.u32 1.1754944e-38, %v568
    %v570 = vsel %vm567, %v569, %v565
    %v571 = vrcp.pop %v472
    %v572 = vmul.f32 %v472, %v571
    %v573 = vsub.f32 1.0, %v572
    %v574 = vmul.f32 %v571, %v573
    %v575 = vadd.f32 %v571, %v574
    %vm576 = vweird.f32 %v472
    %vm577 = vweird.f32 %v571
    %vm578 = vmor %vm576, %vm577
    %v579 = vsel %vm578, %v571, %v575
    %v580 = vand.u32 2147483647, %v472
    %vm581 = vcmp.eq.f32.partialorder %v580, 8.507059e+37
    %v582 = vand.u32 %v472, 2147483648
    %v583 = vor.u32 1.1754944e-38, %v582
    %v584 = vsel %vm581, %v583, %v579
    %v585 = vmul.f32 %v434, %v486
    %v586 = vmul.f32 %v436, %v500
    %v587 = vmul.f32 %v438, %v514
    %v588 = vmul.f32 %v440, %v528
    %v589 = vmul.f32 %v442, %v542
    %v590 = vmul.f32 %v444, %v556
    %v591 = vmul.f32 %v446, %v570
    %v592 = vmul.f32 %v448, %v584
    %vm593 = vcmask 64512
    %v595 = vsel %vm593, %v585, 0
    %597 = vmatpush.msra.mxu0 0.0
    %598 = vmatpush.msra.mxu0 0.0
    %599 = vmatpush.msra.mxu0 0.0
    %600 = vmatpush.msra.mxu0 0.0
    %601 = vmatpush.msra.mxu0 0.0
    %602 = vmatpush.msra.mxu0 0.0
    %603 = vmatpush.msra.mxu0 0.0
    %604 = vmatpush.msra.mxu0 0.0
    %605 = vmatpush.msra.mxu0 0.0
    %606 = vmatpush.msra.mxu0 0.0
    %607 = vmatpush.msra.mxu0 0.0
    %608 = vmatpush.msra.mxu0 0.0
    %609 = vmatpush.msra.mxu0 0.0
    %610 = vmatpush.msra.mxu0 0.0
    %611 = vmatpush.msra.mxu0 0.0
    %612 = vmatpush.msra.mxu0 %v160
    %613 = vmatmul.f32.gmra.mxu0 %v595
    %v614 = vpop.f32.mrf.mxu0
    %v615 = vadd.f32 0.0, %v614
    %616 = vdwg.mxu0
    %v618 = vsel %vm593, %v586, 0
    %620 = vmatpush.msra.mxu0 0.0
    %621 = vmatpush.msra.mxu0 0.0
    %622 = vmatpush.msra.mxu0 0.0
    %623 = vmatpush.msra.mxu0 0.0
    %624 = vmatpush.msra.mxu0 0.0
    %625 = vmatpush.msra.mxu0 0.0
    %626 = vmatpush.msra.mxu0 0.0
    %627 = vmatpush.msra.mxu0 0.0
    %628 = vmatpush.msra.mxu0 0.0
    %629 = vmatpush.msra.mxu0 0.0
    %630 = vmatpush.msra.mxu0 0.0
    %631 = vmatpush.msra.mxu0 0.0
    %632 = vmatpush.msra.mxu0 0.0
    %633 = vmatpush.msra.mxu0 0.0
    %634 = vmatpush.msra.mxu0 0.0
    %635 = vmatpush.msra.mxu0 %v161
    %636 = vmatmul.f32.gmra.mxu0 %v618
    %v637 = vpop.f32.mrf.mxu0
    %v638 = vadd.f32 0.0, %v637
    %639 = vdwg.mxu0
    %v641 = vsel %vm593, %v587, 0
    %643 = vmatpush.msra.mxu0 0.0
    %644 = vmatpush.msra.mxu0 0.0
    %645 = vmatpush.msra.mxu0 0.0
    %646 = vmatpush.msra.mxu0 0.0
    %647 = vmatpush.msra.mxu0 0.0
    %648 = vmatpush.msra.mxu0 0.0
    %649 = vmatpush.msra.mxu0 0.0
    %650 = vmatpush.msra.mxu0 0.0
    %651 = vmatpush.msra.mxu0 0.0
    %652 = vmatpush.msra.mxu0 0.0
    %653 = vmatpush.msra.mxu0 0.0
    %654 = vmatpush.msra.mxu0 0.0
    %655 = vmatpush.msra.mxu0 0.0
    %656 = vmatpush.msra.mxu0 0.0
    %657 = vmatpush.msra.mxu0 0.0
    %658 = vmatpush.msra.mxu0 %v162
    %659 = vmatmul.f32.gmra.mxu0 %v641
    %v660 = vpop.f32.mrf.mxu0
    %v661 = vadd.f32 0.0, %v660
    %662 = vdwg.mxu0
    %v664 = vsel %vm593, %v588, 0
    %666 = vmatpush.msra.mxu0 0.0
    %667 = vmatpush.msra.mxu0 0.0
    %668 = vmatpush.msra.mxu0 0.0
    %669 = vmatpush.msra.mxu0 0.0
    %670 = vmatpush.msra.mxu0 0.0
    %671 = vmatpush.msra.mxu0 0.0
    %672 = vmatpush.msra.mxu0 0.0
    %673 = vmatpush.msra.mxu0 0.0
    %674 = vmatpush.msra.mxu0 0.0
    %675 = vmatpush.msra.mxu0 0.0
    %676 = vmatpush.msra.mxu0 0.0
    %677 = vmatpush.msra.mxu0 0.0
    %678 = vmatpush.msra.mxu0 0.0
    %679 = vmatpush.msra.mxu0 0.0
    %680 = vmatpush.msra.mxu0 0.0
    %681 = vmatpush.msra.mxu0 %v163
    %682 = vmatmul.f32.gmra.mxu0 %v664
    %v683 = vpop.f32.mrf.mxu0
    %v684 = vadd.f32 0.0, %v683
    %685 = vdwg.mxu0
    %v687 = vsel %vm593, %v589, 0
    %689 = vmatpush.msra.mxu0 0.0
    %690 = vmatpush.msra.mxu0 0.0
    %691 = vmatpush.msra.mxu0 0.0
    %692 = vmatpush.msra.mxu0 0.0
    %693 = vmatpush.msra.mxu0 0.0
    %694 = vmatpush.msra.mxu0 0.0
    %695 = vmatpush.msra.mxu0 0.0
    %696 = vmatpush.msra.mxu0 0.0
    %697 = vmatpush.msra.mxu0 0.0
    %698 = vmatpush.msra.mxu0 0.0
    %699 = vmatpush.msra.mxu0 0.0
    %700 = vmatpush.msra.mxu0 0.0
    %701 = vmatpush.msra.mxu0 0.0
    %702 = vmatpush.msra.mxu0 0.0
    %703 = vmatpush.msra.mxu0 0.0
    %704 = vmatpush.msra.mxu0 %v164
    %705 = vmatmul.f32.gmra.mxu0 %v687
    %v706 = vpop.f32.mrf.mxu0
    %v707 = vadd.f32 0.0, %v706
    %708 = vdwg.mxu0
    %v710 = vsel %vm593, %v590, 0
    %712 = vmatpush.msra.mxu0 0.0
    %713 = vmatpush.msra.mxu0 0.0
    %714 = vmatpush.msra.mxu0 0.0
    %715 = vmatpush.msra.mxu0 0.0
    %716 = vmatpush.msra.mxu0 0.0
    %717 = vmatpush.msra.mxu0 0.0
    %718 = vmatpush.msra.mxu0 0.0
    %719 = vmatpush.msra.mxu0 0.0
    %720 = vmatpush.msra.mxu0 0.0
    %721 = vmatpush.msra.mxu0 0.0
    %722 = vmatpush.msra.mxu0 0.0
    %723 = vmatpush.msra.mxu0 0.0
    %724 = vmatpush.msra.mxu0 0.0
    %725 = vmatpush.msra.mxu0 0.0
    %726 = vmatpush.msra.mxu0 0.0
    %727 = vmatpush.msra.mxu0 %v165
    %728 = vmatmul.f32.gmra.mxu0 %v710
    %v729 = vpop.f32.mrf.mxu0
    %v730 = vadd.f32 0.0, %v729
    %731 = vdwg.mxu0
    %v733 = vsel %vm593, %v591, 0
    %735 = vmatpush.msra.mxu0 0.0
    %736 = vmatpush.msra.mxu0 0.0
    %737 = vmatpush.msra.mxu0 0.0
    %738 = vmatpush.msra.mxu0 0.0
    %739 = vmatpush.msra.mxu0 0.0
    %740 = vmatpush.msra.mxu0 0.0
    %741 = vmatpush.msra.mxu0 0.0
    %742 = vmatpush.msra.mxu0 0.0
    %743 = vmatpush.msra.mxu0 0.0
    %744 = vmatpush.msra.mxu0 0.0
    %745 = vmatpush.msra.mxu0 0.0
    %746 = vmatpush.msra.mxu0 0.0
    %747 = vmatpush.msra.mxu0 0.0
    %748 = vmatpush.msra.mxu0 0.0
    %749 = vmatpush.msra.mxu0 0.0
    %750 = vmatpush.msra.mxu0 %v166
    %751 = vmatmul.f32.gmra.mxu0 %v733
    %v752 = vpop.f32.mrf.mxu0
    %v753 = vadd.f32 0.0, %v752
    %754 = vdwg.mxu0
    %v756 = vsel %vm593, %v592, 0
    %758 = vmatpush.msra.mxu0 0.0
    %759 = vmatpush.msra.mxu0 0.0
    %760 = vmatpush.msra.mxu0 0.0
    %761 = vmatpush.msra.mxu0 0.0
    %762 = vmatpush.msra.mxu0 0.0
    %763 = vmatpush.msra.mxu0 0.0
    %764 = vmatpush.msra.mxu0 0.0
    %765 = vmatpush.msra.mxu0 0.0
    %766 = vmatpush.msra.mxu0 0.0
    %767 = vmatpush.msra.mxu0 0.0
    %768 = vmatpush.msra.mxu0 0.0
    %769 = vmatpush.msra.mxu0 0.0
    %770 = vmatpush.msra.mxu0 0.0
    %771 = vmatpush.msra.mxu0 0.0
    %772 = vmatpush.msra.mxu0 0.0
    %773 = vmatpush.msra.mxu0 %v167
    %774 = vmatmul.f32.gmra.mxu0 %v756
    %v775 = vpop.f32.mrf.mxu0
    %v776 = vadd.f32 0.0, %v775
    %777 = vdwg.mxu0
    %v778 = vld [vmem:[%s7] sm:$0xff]
    %v779 = vld [vmem:[%s7 + $0x8] sm:$0xff]
    %v780 = vld [vmem:[%s7 + $0x10] sm:$0xff]
    %v781 = vld [vmem:[%s7 + $0x18] sm:$0xff]
    %v782 = vld [vmem:[#allocation2] sm:$0xff]
    %v783 = vld [vmem:[#allocation2 + $0x8] sm:$0xff]
    %v784 = vld [vmem:[#allocation2 + $0x10] sm:$0xff]
    %v785 = vld [vmem:[#allocation2 + $0x18] sm:$0xff]
    %v794 = vrot.slane %v638, 7
    %vm795 = vcmask 1041409
    %v796 = vsel %vm795, %v794, %v615
    %v797 = vrot.slane %v661, 6
    %vm798 = vcmask 1042434
    %v799 = vsel %vm798, %v797, %v796
    %v800 = vrot.slane %v684, 5
    %vm801 = vcmask 1043459
    %v802 = vsel %vm801, %v800, %v799
    %v803 = vrot.slane %v707, 4
    %vm804 = vcmask 1044484
    %v805 = vsel %vm804, %v803, %v802
    %v806 = vrot.slane %v730, 3
    %vm807 = vcmask 1045509
    %v808 = vsel %vm807, %v806, %v805
    %v809 = vrot.slane %v753, 2
    %vm810 = vcmask 1046534
    %v811 = vsel %vm810, %v809, %v808
    %v812 = vrot.slane %v776, 1
    %vm813 = vcmask 1047559
    %v814 = vsel %vm813, %v812, %v811
    %v815 = vsel %vm63, %v814, 0
    %817 = vmatpush.msra.mxu0 0.0
    %818 = vmatpush.msra.mxu0 0.0
    %819 = vmatpush.msra.mxu0 0.0
    %820 = vmatpush.msra.mxu0 0.0
    %821 = vmatpush.msra.mxu0 0.0
    %822 = vmatpush.msra.mxu0 0.0
    %823 = vmatpush.msra.mxu0 0.0
    %824 = vmatpush.msra.mxu0 0.0
    %825 = vmatpush.msra.mxu0 0.0
    %826 = vmatpush.msra.mxu0 0.0
    %827 = vmatpush.msra.mxu0 0.0
    %828 = vmatpush.msra.mxu0 0.0
    %829 = vmatpush.msra.mxu0 %v785
    %830 = vmatpush.msra.mxu0 %v784
    %831 = vmatpush.msra.mxu0 %v783
    %832 = vmatpush.msra.mxu0 %v782
    %833 = vmatmul.f32.gmra.mxu0 %v815
    %v834 = vpop.f32.mrf.mxu0
    %v835 = vadd.f32 0.0, %v834
    %836 = vdwg.mxu0
    %837 = vrot.lane.b32.xlu0 %v159, 96
    %v838 = vpop.permute.xlu0 %837
    %v839 = vsel %vm63, %v838, 0
    %841 = vmatpush.msra.mxu0 0.0
    %842 = vmatpush.msra.mxu0 0.0
    %843 = vmatpush.msra.mxu0 0.0
    %844 = vmatpush.msra.mxu0 0.0
    %845 = vmatpush.msra.mxu0 0.0
    %846 = vmatpush.msra.mxu0 0.0
    %847 = vmatpush.msra.mxu0 0.0
    %848 = vmatpush.msra.mxu0 0.0
    %849 = vmatpush.msra.mxu0 0.0
    %850 = vmatpush.msra.mxu0 0.0
    %851 = vmatpush.msra.mxu0 0.0
    %852 = vmatpush.msra.mxu0 0.0
    %853 = vmatpush.msra.mxu0 %v781
    %854 = vmatpush.msra.mxu0 %v780
    %855 = vmatpush.msra.mxu0 %v779
    %856 = vmatpush.msra.mxu0 %v778
    %857 = vmatmul.f32.gmra.mxu0 %v839
    %v858 = vpop.f32.mrf.mxu0
    %v859 = vadd.f32 %v835, %v858
    %860 = vdwg.mxu0
    %v861 = vld [vmem:[%s9] sm:$0x1]
    %v863 = vperm.slane %v861, 0
    %v865 = vadd.f32 %v859, %v863
    %v866 = vtanh.pop %v865
    %867 = vst.msk [vmem:[%s10] sm:$0xff] %vm63, %v866
    %869 = vst.msk [vmem:[%s11] sm:$0xff] %vm63, %v838
    // Predicated region
    $region46: #{_decoder_step.2} parent=1 // pred_check
      _
    $region47: #{_decoder_step.2} parent=1 // pred_check_branch
      %871 = sbr.rel (0) target = $region49
    $region48: #{_decoder_step.2} parent=1 // pred_region
      _
    $region49: #{_decoder_step.2} parent=1 // pred_fallthru
      _
    // Predicated region
    $region50: #{_decoder_step.2} parent=1 // pred_check
      _
    $region51: #{_decoder_step.2} parent=1 // pred_check_branch
      %873 = sbr.rel (0) target = $region53
    $region52: #{_decoder_step.2} parent=1 // pred_region
      _
    $region53: #{_decoder_step.2} parent=1 // pred_fallthru
      _
    // Predicated region
    $region54: #{_decoder_step.2} parent=1 // pred_check
      _
    $region55: #{_decoder_step.2} parent=1 // pred_check_branch
      %875 = sbr.rel (0) target = $region57
    $region56: #{_decoder_step.2} parent=1 // pred_region
      _
    $region57: #{_decoder_step.2} parent=1 // pred_fallthru
      _
    // Predicated region
    $region58: #{_decoder_step.2} parent=1 // pred_check
      _
    $region59: #{_decoder_step.2} parent=1 // pred_check_branch
      %877 = sbr.rel (0) target = $region61
    $region60: #{_decoder_step.2} parent=1 // pred_region
      _
    $region61: #{_decoder_step.2} parent=1 // pred_fallthru
      _
    %878 = vsyncpa [#allocation3], 1

</llo_original>
